<compile_context>
chip_gen: v5e
topology: v5e:2x2
jax: 0.10.0
libtpu: 0.0.40
codegen_flags: <defaults>
</compile_context>

<pallas_src>
import jax
import jax.numpy as jnp
from jax.experimental import pallas as pl
from jax.experimental.pallas import tpu as pltpu

IN_F, H1_F, H2_F = 14, 128, 64


def _round_up(n, m):
    return ((n + m - 1) // m) * m


def mlp_kernel(x_ref, w1_ref, b1_ref, w2_ref, b2_ref, w3_ref, b3_ref, o_ref):
    # x arrives f32 from HBM; cast to bf16 in VMEM for the MXU (no wrapper pass).
    x = x_ref[...].astype(jnp.bfloat16)                   # (TM, 14)

    # Layer 1: MXU matmul (bf16 inputs, f32 accumulate) + bias + ReLU.
    h1 = jnp.dot(x, w1_ref[...], preferred_element_type=jnp.float32) + b1_ref[...]
    h1 = jnp.maximum(h1, 0.0)                              # (TM, 128) f32
    # Dropout(0.3): identity in eval mode.

    # Layer 2: cast activations to bf16 for the MXU, accumulate in f32.
    h2 = jnp.dot(h1.astype(jnp.bfloat16), w2_ref[...],
                 preferred_element_type=jnp.float32) + b2_ref[...]
    h2 = jnp.maximum(h2, 0.0)                              # (TM, 64) f32
    # Dropout(0.3): identity in eval mode.

    # Layer 3 (out_features=1): VPU elementwise multiply + XLU lane reduction,
    # SMEM scalar bias — avoids a degenerate 1-lane MXU matmul.
    out = jnp.sum(h2 * w3_ref[...], axis=-1, keepdims=True) + b3_ref[0, 0]
    o_ref[...] = out.astype(o_ref.dtype)                   # (TM, 1)


def _choose_tm(batch, tm_max):
    """Batch tile: big enough to amortize ~0.35us/step grid overhead, lane/sublane
    aligned, and split so moderate B still produces >= 2 tiles (v7x megacore)."""
    if batch <= 256:
        return _round_up(batch, 8)
    half = _round_up(pl.cdiv(batch, 2), 128)
    return max(256, min(tm_max, half))


def mymodel_forward(x, params, *, tm_max=4096):
    """x: (B, 14) float32 -> (B, 1) float32.

    tm_max=4096 keeps double-buffered (lane-padded) I/O + f32 intermediates well
    under v7x's 64 MiB VMEM; pass tm_max=8192 on v5e/v6e (128 MiB) for large B.
    """
    w1, b1, w2, b2, w3, b3 = params
    B = x.shape[0]

    tm = _choose_tm(B, tm_max)
    num_tiles = pl.cdiv(B, tm)

    # Weights are tiny: cast once to bf16 for the MXU; biases stay f32.
    w1_bf = w1.astype(jnp.bfloat16)
    w2_bf = w2.astype(jnp.bfloat16)
    w3_row = w3.reshape(1, H2_F).astype(jnp.float32)     # (1, 64)
    b3_s = b3.reshape(1, 1).astype(jnp.float32)          # scalar, lives in SMEM

    flops = 2 * B * (IN_F * H1_F + H1_F * H2_F + H2_F)
    bytes_accessed = (
        B * IN_F * 4 + B * 1 * 4                          # x (f32) read + out (f32) write
        + (IN_F * H1_F + H1_F * H2_F) * 2                 # w1, w2 (bf16)
        + (H1_F + H2_F + H2_F + 1) * 4                    # b1, b2, w3 row, b3 (f32)
    )

    out = pl.pallas_call(
        mlp_kernel,
        out_shape=jax.ShapeDtypeStruct((B, 1), jnp.float32),
        grid=(num_tiles,),
        in_specs=[
            pl.BlockSpec((tm, IN_F), lambda i: (i, 0)),         # x: tiled over batch
            pl.BlockSpec((IN_F, H1_F), lambda i: (0, 0)),       # w1: resident
            pl.BlockSpec((1, H1_F), lambda i: (0, 0)),          # b1: resident
            pl.BlockSpec((H1_F, H2_F), lambda i: (0, 0)),       # w2: resident
            pl.BlockSpec((1, H2_F), lambda i: (0, 0)),          # b2: resident
            pl.BlockSpec((1, H2_F), lambda i: (0, 0)),          # w3 row: resident
            pl.BlockSpec(memory_space=pltpu.MemorySpace.SMEM),  # b3 scalar
        ],
        out_specs=pl.BlockSpec((tm, 1), lambda i: (i, 0)),
        compiler_params=pltpu.CompilerParams(
            dimension_semantics=("parallel",),
            vmem_limit_bytes=48 * 1024 * 1024,
        ),
        cost_estimate=pl.CostEstimate(
            flops=flops, transcendentals=0, bytes_accessed=bytes_accessed),
    )(x, w1_bf, b1, w2_bf, b2, w3_row, b3_s)

    return out


def init_params(key):
    """Deterministic init mirroring nn.Linear shapes (weights stored as (in, out))."""
    ks = jax.random.split(key, 6)

    def linear(kw, kb, fan_in, fan_out):
        # PyTorch default: U(-1/sqrt(fan_in), 1/sqrt(fan_in))
        bound = 1.0 / jnp.sqrt(jnp.float32(fan_in))
        w = jax.random.uniform(kw, (fan_in, fan_out), jnp.float32, -bound, bound)
        b = jax.random.uniform(kb, (1, fan_out), jnp.float32, -bound, bound)
        return w, b

    w1, b1 = linear(ks[0], ks[1], IN_F, H1_F)
    w2, b2 = linear(ks[2], ks[3], H1_F, H2_F)
    w3, b3 = linear(ks[4], ks[5], H2_F, 1)
    return (w1, b1, w2, b2, w3, b3)


def reference_forward(x, params):
    """Pure-JAX reference mirroring the kernel's bf16 quantization (f32 math)."""
    w1, b1, w2, b2, w3, b3 = params
    xq = x.astype(jnp.bfloat16).astype(jnp.float32)
    w1q = w1.astype(jnp.bfloat16).astype(jnp.float32)
    w2q = w2.astype(jnp.bfloat16).astype(jnp.float32)
    h1 = jnp.maximum(xq @ w1q + b1, 0.0)
    h1 = h1.astype(jnp.bfloat16).astype(jnp.float32)
    h2 = jnp.maximum(h1 @ w2q + b2, 0.0)
    return h2 @ w3 + b3


if __name__ == "__main__":
    key = jax.random.PRNGKey(0)
    k_x, k_x2, k_p = jax.random.split(key, 3)
    params = init_params(k_p)

    # Small batch (single exact tile).
    B = 8
    x = jax.random.normal(k_x, (B, IN_F), jnp.float32)
    out = jax.block_until_ready(mymodel_forward(x, params))
    ref = reference_forward(x, params)
    assert out.shape == (B, 1)
    assert jnp.allclose(out, ref, atol=1e-3, rtol=1e-3), "mismatch vs reference (B=8)"

    # Moderate ragged batch (2 tiles, masked edge-block writes).
    B2 = 300
    x2 = jax.random.normal(k_x2, (B2, IN_F), jnp.float32)
    out2 = jax.block_until_ready(mymodel_forward(x2, params))
    ref2 = reference_forward(x2, params)
    assert out2.shape == (B2, 1)
    assert jnp.allclose(out2, ref2, atol=1e-3, rtol=1e-3), "mismatch vs reference (B=300)"

    print("KERNEL_OK")
</pallas_src>

<mosaic_0001>
module attributes {stable_mosaic.version = 11 : i64} {
  func.func @mlp_kernel(%arg0: i32, %arg1: memref<8x14xf32, #tpu.memory_space<vmem>>, %arg2: memref<14x128xbf16, #tpu.memory_space<vmem>>, %arg3: memref<1x128xf32, #tpu.memory_space<vmem>>, %arg4: memref<128x64xbf16, #tpu.memory_space<vmem>>, %arg5: memref<1x64xf32, #tpu.memory_space<vmem>>, %arg6: memref<1x64xf32, #tpu.memory_space<vmem>>, %arg7: memref<1x1xf32, #tpu.memory_space<smem>>, %arg8: memref<8x1xf32, #tpu.memory_space<vmem>>) attributes {dimension_semantics = [#tpu.dimension_semantics<parallel>], iteration_bounds = array<i64: 1>, scalar_prefetch = 0 : i64, scratch_operands = 0 : i64, tpu.core_type = #tpu.core_type<tc>, window_params = [{transform_indices = @transform_0, window_bounds = array<i64: 8, 14>}, {pipeline_mode = #tpu.pipeline_mode<synchronous>, transform_indices = @transform_1, window_bounds = array<i64: 14, 128>}, {pipeline_mode = #tpu.pipeline_mode<synchronous>, transform_indices = @transform_2, window_bounds = array<i64: 1, 128>}, {pipeline_mode = #tpu.pipeline_mode<synchronous>, transform_indices = @transform_3, window_bounds = array<i64: 128, 64>}, {pipeline_mode = #tpu.pipeline_mode<synchronous>, transform_indices = @transform_4, window_bounds = array<i64: 1, 64>}, {pipeline_mode = #tpu.pipeline_mode<synchronous>, transform_indices = @transform_5, window_bounds = array<i64: 1, 64>}, {transform_indices = @transform_6, window_bounds = array<i64: 1, 1>}, {transform_indices = @transform_7, window_bounds = array<i64: 8, 1>}]} {
    %c0 = arith.constant 0 : index
    %c0_0 = arith.constant 0 : index
    %0 = vector.load %arg1[%c0, %c0_0] : memref<8x14xf32, #tpu.memory_space<vmem>>, vector<8x14xf32>
    %1 = arith.truncf %0 : vector<8x14xf32> to vector<8x14xbf16>
    %c0_1 = arith.constant 0 : index
    %c0_2 = arith.constant 0 : index
    %2 = vector.load %arg2[%c0_1, %c0_2] : memref<14x128xbf16, #tpu.memory_space<vmem>>, vector<14x128xbf16>
    %cst = arith.constant dense<0.000000e+00> : vector<8x128xf32>
    %3 = tpu.matmul %1, %2, %cst {dimension_numbers = #tpu.dot_dimension_numbers<[1], [0], [0], [1], [0, 0, 1, 1], [], []>} : vector<8x14xbf16>, vector<14x128xbf16>, vector<8x128xf32> -> vector<8x128xf32>
    %c0_3 = arith.constant 0 : index
    %c0_4 = arith.constant 0 : index
    %4 = vector.load %arg3[%c0_3, %c0_4] : memref<1x128xf32, #tpu.memory_space<vmem>>, vector<1x128xf32>
    %5 = vector.broadcast %4 : vector<1x128xf32> to vector<8x128xf32>
    %6 = arith.addf %3, %5 : vector<8x128xf32>
    %cst_5 = arith.constant 0.000000e+00 : f32
    %7 = vector.broadcast %cst_5 : f32 to vector<8x128xf32>
    %8 = arith.maximumf %6, %7 : vector<8x128xf32>
    %9 = arith.truncf %8 : vector<8x128xf32> to vector<8x128xbf16>
    %c0_6 = arith.constant 0 : index
    %c0_7 = arith.constant 0 : index
    %10 = vector.load %arg4[%c0_6, %c0_7] : memref<128x64xbf16, #tpu.memory_space<vmem>>, vector<128x64xbf16>
    %cst_8 = arith.constant dense<0.000000e+00> : vector<8x64xf32>
    %11 = tpu.matmul %9, %10, %cst_8 {dimension_numbers = #tpu.dot_dimension_numbers<[1], [0], [0], [1], [0, 0, 1, 1], [], []>} : vector<8x128xbf16>, vector<128x64xbf16>, vector<8x64xf32> -> vector<8x64xf32>
    %c0_9 = arith.constant 0 : index
    %c0_10 = arith.constant 0 : index
    %12 = vector.load %arg5[%c0_9, %c0_10] : memref<1x64xf32, #tpu.memory_space<vmem>>, vector<1x64xf32>
    %13 = vector.broadcast %12 : vector<1x64xf32> to vector<8x64xf32>
    %14 = arith.addf %11, %13 : vector<8x64xf32>
    %cst_11 = arith.constant 0.000000e+00 : f32
    %15 = vector.broadcast %cst_11 : f32 to vector<8x64xf32>
    %16 = arith.maximumf %14, %15 : vector<8x64xf32>
    %c0_12 = arith.constant 0 : index
    %c0_13 = arith.constant 0 : index
    %17 = vector.load %arg6[%c0_12, %c0_13] : memref<1x64xf32, #tpu.memory_space<vmem>>, vector<1x64xf32>
    %18 = vector.broadcast %17 : vector<1x64xf32> to vector<8x64xf32>
    %19 = arith.mulf %16, %18 : vector<8x64xf32>
    %cst_14 = arith.constant dense<0.000000e+00> : vector<8xf32>
    %20 = vector.multi_reduction <add>, %19, %cst_14 [1] : vector<8x64xf32> to vector<8xf32>
    %21 = vector.shape_cast %20 : vector<8xf32> to vector<8x1xf32>
    %c0_15 = arith.constant 0 : index
    %c0_16 = arith.constant 0 : index
    %22 = memref.load %arg7[%c0_15, %c0_16] : memref<1x1xf32, #tpu.memory_space<smem>>
    %23 = vector.broadcast %22 : f32 to vector<8x1xf32>
    %24 = arith.addf %21, %23 : vector<8x1xf32>
    %c0_17 = arith.constant 0 : index
    %c0_18 = arith.constant 0 : index
    %25 = vector.load %arg8[%c0_17, %c0_18] : memref<8x1xf32, #tpu.memory_space<vmem>>, vector<8x1xf32>
    tpu.vector_store %arg8[%c0_17, %c0_18], %24 {strides = array<i32>} : memref<8x1xf32, #tpu.memory_space<vmem>>, vector<8x1xf32>,
    return
  }
  func.func @transform_0(%arg0: i32) -> (i32, i32) {
    %c0_i32 = arith.constant 0 : i32
    %c0_i32_0 = arith.constant 0 : i32
    return %arg0, %c0_i32 : i32, i32
  }
  func.func @transform_1(%arg0: i32) -> (i32, i32) {
    %c0_i32 = arith.constant 0 : i32
    %c0_i32_0 = arith.constant 0 : i32
    %c0_i32_1 = arith.constant 0 : i32
    return %c0_i32, %c0_i32_0 : i32, i32
  }
  func.func @transform_2(%arg0: i32) -> (i32, i32) {
    %c0_i32 = arith.constant 0 : i32
    %c0_i32_0 = arith.constant 0 : i32
    %c0_i32_1 = arith.constant 0 : i32
    return %c0_i32, %c0_i32_0 : i32, i32
  }
  func.func @transform_3(%arg0: i32) -> (i32, i32) {
    %c0_i32 = arith.constant 0 : i32
    %c0_i32_0 = arith.constant 0 : i32
    %c0_i32_1 = arith.constant 0 : i32
    return %c0_i32, %c0_i32_0 : i32, i32
  }
  func.func @transform_4(%arg0: i32) -> (i32, i32) {
    %c0_i32 = arith.constant 0 : i32
    %c0_i32_0 = arith.constant 0 : i32
    %c0_i32_1 = arith.constant 0 : i32
    return %c0_i32, %c0_i32_0 : i32, i32
  }
  func.func @transform_5(%arg0: i32) -> (i32, i32) {
    %c0_i32 = arith.constant 0 : i32
    %c0_i32_0 = arith.constant 0 : i32
    %c0_i32_1 = arith.constant 0 : i32
    return %c0_i32, %c0_i32_0 : i32, i32
  }
  func.func @transform_6(%arg0: i32) -> (i32, i32) {
    %c0_i32 = arith.constant 0 : i32
    %c0_i32_0 = arith.constant 0 : i32
    %c0_i32_1 = arith.constant 0 : i32
    return %c0_i32, %c0_i32_0 : i32, i32
  }
  func.func @transform_7(%arg0: i32) -> (i32, i32) {
    %c0_i32 = arith.constant 0 : i32
    %c0_i32_0 = arith.constant 0 : i32
    return %arg0, %c0_i32 : i32, i32
  }
}

</mosaic_0001>

<llo_original>
// kernel: tpu_custom_call.1
$region0: #{tpu_custom_call.1}
  #allocation0 [shape = 'u32[]', space=smem, size = 0x4, offset = 0x4, fixed_abs, tag = 'smem constant byte address 0x4 - core index']
  #allocation1 [shape = 'u32[72,128]{1,0:T(1,128)}', space=vmem, size = 0x9000, scoped, tag = 'internal scratch']
  #allocation2 [shape = 'f32[1,1]{1,0:T(1,128)S(6)}', space=smem, size = 0x200, scoped, tag = 'scoped memory for tpu_custom_call.1']
  %s0 = inlined_call_operand.vmem [shape: f32[8,14], index: 0, kind: input, shape index: {}]
  %s1 = inlined_call_operand.vmem [shape: bf16[14,128], index: 1, kind: input, shape index: {}]
  %s2 = inlined_call_operand.vmem [shape: f32[1,128], index: 2, kind: input, shape index: {}]
  %s3 = inlined_call_operand.vmem [shape: bf16[128,64], index: 3, kind: input, shape index: {}]
  %s4 = inlined_call_operand.vmem [shape: f32[1,64], index: 4, kind: input, shape index: {}]
  %s5 = inlined_call_operand.vmem [shape: f32[1,64], index: 5, kind: input, shape index: {}]
  %s6 = inlined_call_operand.<no memory space> [shape: f32[1,1], index: 6, kind: input, shape index: {}]
  %s7 = inlined_call_operand.vmem [shape: f32[8,1], index: 7, kind: output, shape index: {}]
  %s8 = sld [smem:[#allocation0]]
  $region38: #{tpu_custom_call.1} parent=0
    _
  %s10 = ssub.s32 1, %s8
  %s11 = scalar_select 0, %s10, %s8
  %12 = sst [smem:[#allocation2]] %s6
  // Predicated region
  $region2: #{tpu_custom_call.1} parent=0 // pred_check
    _
  $region3: #{tpu_custom_call.1} parent=0 // pred_check_branch
    %14 = sbr.rel (0) target = $region5
  $region4: #{tpu_custom_call.1} parent=0 // pred_region
    _
  $region5: #{tpu_custom_call.1} parent=0 // pred_fallthru
    _
  // Predicated region
  $region6: #{tpu_custom_call.1} parent=0 // pred_check
    _
  $region7: #{tpu_custom_call.1} parent=0 // pred_check_branch
    %16 = sbr.rel (0) target = $region9
  $region8: #{tpu_custom_call.1} parent=0 // pred_region
    _
  $region9: #{tpu_custom_call.1} parent=0 // pred_fallthru
    _
  // Predicated region
  $region10: #{tpu_custom_call.1} parent=0 // pred_check
    _
  $region11: #{tpu_custom_call.1} parent=0 // pred_check_branch
    %18 = sbr.rel (0) target = $region13
  $region12: #{tpu_custom_call.1} parent=0 // pred_region
    _
  $region13: #{tpu_custom_call.1} parent=0 // pred_fallthru
    _
  // Predicated region
  $region14: #{tpu_custom_call.1} parent=0 // pred_check
    _
  $region15: #{tpu_custom_call.1} parent=0 // pred_check_branch
    %20 = sbr.rel (0) target = $region17
  $region16: #{tpu_custom_call.1} parent=0 // pred_region
    _
  $region17: #{tpu_custom_call.1} parent=0 // pred_fallthru
    _
  // Predicated region
  $region18: #{tpu_custom_call.1} parent=0 // pred_check
    _
  $region19: #{tpu_custom_call.1} parent=0 // pred_check_branch
    %22 = sbr.rel (0) target = $region21
  $region20: #{tpu_custom_call.1} parent=0 // pred_region
    _
  $region21: #{tpu_custom_call.1} parent=0 // pred_fallthru
    _
  // Predicated region
  $region22: #{tpu_custom_call.1} parent=0 // pred_check
    _
  $region23: #{tpu_custom_call.1} parent=0 // pred_check_branch
    %24 = sbr.rel (0) target = $region25
  $region24: #{tpu_custom_call.1} parent=0 // pred_region
    _
  $region25: #{tpu_custom_call.1} parent=0 // pred_fallthru
    _
  // Predicated region
  $region26: #{tpu_custom_call.1} parent=0 // pred_check
    _
  $region27: #{tpu_custom_call.1} parent=0 // pred_check_branch
    %26 = sbr.rel (0) target = $region29
  $region28: #{tpu_custom_call.1} parent=0 // pred_region
    _
  $region29: #{tpu_custom_call.1} parent=0 // pred_fallthru
    _
  %v28 = vld [vmem:[%s0] sm:$0xff]
  %v29 = vpack.c.bf16 %v28, %v28
  %v30 = vld [vmem:[%s1] sm:$0xf]
  %v31 = vld [vmem:[%s1 + $0x4] sm:$0x7]
  %v32 = vld [vmem:[%s2] sm:$0x1]
  %v34 = vperm.slane %v32, 0
  %v38 = vunpack.c.l.b16 %v30
  %v39 = vunpack.c.l.b16 %v31
  %v40 = vpack.c.b16 %v39, %v38
  %vm41 = vcmask 113664
  %v43 = vsel %vm41, %v29, 0
  %vm45 = vcmask 1046528
  %v47 = vsel %vm45, %v40, 0
  %49 = vmatpush.bf16.msra.mxu0 0
  %50 = vmatpush.bf16.msra.mxu0 0
  %51 = vmatpush.bf16.msra.mxu0 0
  %52 = vmatpush.bf16.msra.mxu0 0
  %53 = vmatpush.bf16.msra.mxu0 0
  %54 = vmatpush.bf16.msra.mxu0 0
  %55 = vmatpush.bf16.msra.mxu0 0
  %56 = vmatpush.bf16.msra.mxu0 %v47
  %57 = vmatmul.bf16.gmra.mxu0 %v43
  %v58 = vpop.f32.mrf.mxu0
  %v59 = vadd.f32 %v34, %v58
  %v60 = vpop.f32.mrf.mxu0
  %61 = vdwg.mxu0
  %v62 = vmax.f32 %v59, 0.0
  %v63 = vpack.c.bf16 %v62, %v62
  %v64 = vld [vmem:[%s3] sm:$0xf]
  %v65 = vld [vmem:[%s3 + $0x4] sm:$0xf]
  %v66 = vld [vmem:[%s3 + $0x8] sm:$0xf]
  %v67 = vld [vmem:[%s3 + $0xc] sm:$0xf]
  %v68 = vld [vmem:[%s3 + $0x10] sm:$0xf]
  %v69 = vld [vmem:[%s3 + $0x14] sm:$0xf]
  %v70 = vld [vmem:[%s3 + $0x18] sm:$0xf]
  %v71 = vld [vmem:[%s3 + $0x1c] sm:$0xf]
  %v72 = vld [vmem:[%s3 + $0x20] sm:$0xf]
  %v73 = vld [vmem:[%s3 + $0x24] sm:$0xf]
  %v74 = vld [vmem:[%s3 + $0x28] sm:$0xf]
  %v75 = vld [vmem:[%s3 + $0x2c] sm:$0xf]
  %v76 = vld [vmem:[%s3 + $0x30] sm:$0xf]
  %v77 = vld [vmem:[%s3 + $0x34] sm:$0xf]
  %v78 = vld [vmem:[%s3 + $0x38] sm:$0xf]
  %v79 = vld [vmem:[%s3 + $0x3c] sm:$0xf]
  %v80 = vld [vmem:[%s4] sm:$0x1]
  %v82 = vperm.slane %v80, 0
  %v100 = vunpack.c.l.b16 %v64
  %v101 = vunpack.c.l.b16 %v65
  %v102 = vunpack.c.l.b16 %v66
  %v103 = vunpack.c.l.b16 %v67
  %v104 = vunpack.c.l.b16 %v68
  %v105 = vunpack.c.l.b16 %v69
  %v106 = vunpack.c.l.b16 %v70
  %v107 = vunpack.c.l.b16 %v71
  %v108 = vunpack.c.l.b16 %v72
  %v109 = vunpack.c.l.b16 %v73
  %v110 = vunpack.c.l.b16 %v74
  %v111 = vunpack.c.l.b16 %v75
  %v112 = vunpack.c.l.b16 %v76
  %v113 = vunpack.c.l.b16 %v77
  %v114 = vunpack.c.l.b16 %v78
  %v115 = vunpack.c.l.b16 %v79
  %v116 = vpack.c.b16 %v101, %v100
  %v117 = vpack.c.b16 %v103, %v102
  %v118 = vpack.c.b16 %v105, %v104
  %v119 = vpack.c.b16 %v107, %v106
  %v120 = vpack.c.b16 %v109, %v108
  %v121 = vpack.c.b16 %v111, %v110
  %v122 = vpack.c.b16 %v113, %v112
  %v123 = vpack.c.b16 %v115, %v114
  %132 = vmatpush.bf16.msra.mxu0 %v123
  %133 = vmatpush.bf16.msra.mxu0 %v122
  %134 = vmatpush.bf16.msra.mxu0 %v121
  %135 = vmatpush.bf16.msra.mxu0 %v120
  %136 = vmatpush.bf16.msra.mxu0 %v119
  %137 = vmatpush.bf16.msra.mxu0 %v118
  %138 = vmatpush.bf16.msra.mxu0 %v117
  %139 = vmatpush.bf16.msra.mxu0 %v116
  %140 = vmatmul.bf16.gmra.mxu0 %v63
  %v141 = vpop.f32.mrf.mxu0
  %v142 = vadd.f32 %v82, %v141
  %v143 = vpop.f32.mrf.mxu0
  %144 = vdwg.mxu0
  %v145 = vmax.f32 %v142, 0.0
  %v146 = vld [vmem:[%s5] sm:$0x1]
  %v148 = vperm.slane %v146, 0
  %v150 = vmul.f32 %v145, %v148
  %vm151 = vcmask 523264
  %v152 = vsel %vm151, %v150, 0.0
  %153 = vadd.xlane.f32.xlu0 %v152
  %v154 = vpop.xlane.xlu0 %153
  %s155 = sld [smem:[#allocation2]]
  %v156 = vstv %s155
  %v157 = vadd.f32 %v154, %v156
  %vm158 = vcmask 7168
  %159 = vst.msk [vmem:[%s7] sm:$0xff] %vm158, %v157
  // Predicated region
  $region30: #{tpu_custom_call.1} parent=0 // pred_check
    _
  $region31: #{tpu_custom_call.1} parent=0 // pred_check_branch
    %161 = sbr.rel (0) target = $region33
  $region32: #{tpu_custom_call.1} parent=0 // pred_region
    _
  $region33: #{tpu_custom_call.1} parent=0 // pred_fallthru
    _
  // Predicated region
  $region34: #{tpu_custom_call.1} parent=0 // pred_check
    _
  $region35: #{tpu_custom_call.1} parent=0 // pred_check_branch
    %163 = sbr.rel (0) target = $region37
  $region36: #{tpu_custom_call.1} parent=0 // pred_region
    _
  $region37: #{tpu_custom_call.1} parent=0 // pred_fallthru
    _

</llo_original>
